<compile_context>
chip_gen: v5e
topology: v5e:2x2
jax: 0.10.0
libtpu: 0.0.40
codegen_flags: <defaults>
</compile_context>

<pallas_src>
import functools

import jax
import jax.numpy as jnp
from jax.experimental import pallas as pl
from jax.experimental.pallas import tpu as pltpu

BLOCK_SIZE = 256          # max sequence length for the causal mask
N_EMBD = 384
NUM_HEADS = 6
HEAD_SIZE = N_EMBD // NUM_HEADS   # 64


# ---------------------------------------------------------------------------
# Kernel: fused K/V projection + causal attention for a tile of `bb` batches.
# ---------------------------------------------------------------------------
def head_kernel(x_ref, wk_ref, wv_ref, o_ref, *, scale):
    bb, T, C = x_ref.shape
    H = wk_ref.shape[1]

    # bf16 operands into the MXU, f32 accumulation.
    x = x_ref[...].astype(jnp.bfloat16)              # (bb, T, C)
    x2d = x.reshape(bb * T, C)                       # lane-dense, MXU-friendly M
    wk = wk_ref[...].astype(jnp.bfloat16)            # (C, H)
    wv = wv_ref[...].astype(jnp.bfloat16)            # (C, H)

    k = jnp.dot(x2d, wk, preferred_element_type=jnp.float32).reshape(bb, T, H)
    v = jnp.dot(x2d, wv, preferred_element_type=jnp.float32).reshape(bb, T, H)
    q = k  # reference module computes q = self.key(x) as well

    # scores: (bb, T, T), f32 accumulation
    wei = jnp.einsum(
        "bqh,bkh->bqk",
        q.astype(jnp.bfloat16), k.astype(jnp.bfloat16),
        preferred_element_type=jnp.float32,
    ) * scale

    # causal mask (tril): built once per grid step, cheap VPU work
    row = jax.lax.broadcasted_iota(jnp.int32, (T, T), 0)
    col = jax.lax.broadcasted_iota(jnp.int32, (T, T), 1)
    causal = (col <= row)[None, :, :]
    wei = jnp.where(causal, wei, -jnp.inf)

    # numerically-stable softmax in f32 (diagonal is always unmasked -> finite max)
    m = jnp.max(wei, axis=-1, keepdims=True)
    e = jnp.exp(wei - m)
    p = e / jnp.sum(e, axis=-1, keepdims=True)

    # dropout on p is identity (eval mode)
    out = jnp.einsum(
        "bqk,bkh->bqh",
        p.astype(jnp.bfloat16), v.astype(jnp.bfloat16),
        preferred_element_type=jnp.float32,
    )
    o_ref[...] = out.astype(o_ref.dtype)


# ---------------------------------------------------------------------------
# Wrapper
# ---------------------------------------------------------------------------
def _pick_batch_block(B, T):
    """Aim for ~128 projection rows per grid step; must divide B."""
    bb = min(B, max(1, 128 // max(T, 1)))
    while B % bb:
        bb -= 1
    return bb


def head_forward(x, wk, wv):
    """x: (B, T, C) f32; wk, wv: (C, H) projection weights (x @ w layout)."""
    B, T, C = x.shape
    H = wk.shape[1]
    assert T <= BLOCK_SIZE, "sequence length exceeds causal-mask block_size"

    bb = _pick_batch_block(B, T)
    grid = (B // bb,)
    scale = float(H) ** -0.5

    itemsize = jnp.dtype(x.dtype).itemsize
    cost = pl.CostEstimate(
        flops=2 * B * T * C * H * 2 + 2 * B * T * T * H * 2,
        transcendentals=B * T * T,
        bytes_accessed=(x.size + wk.size + wv.size + B * T * H) * itemsize,
    )

    return pl.pallas_call(
        functools.partial(head_kernel, scale=scale),
        out_shape=jax.ShapeDtypeStruct((B, T, H), x.dtype),
        grid=grid,
        in_specs=[
            pl.BlockSpec((bb, T, C), lambda i: (i, 0, 0)),
            pl.BlockSpec((C, H), lambda i: (0, 0)),
            pl.BlockSpec((C, H), lambda i: (0, 0)),
        ],
        out_specs=pl.BlockSpec((bb, T, H), lambda i: (i, 0, 0)),
        compiler_params=pltpu.CompilerParams(
            dimension_semantics=("parallel",)),
        cost_estimate=cost,
    )(x, wk, wv)


# ---------------------------------------------------------------------------
# Parameter init (PyTorch nn.Linear default: U(-1/sqrt(fan_in), 1/sqrt(fan_in)),
# bias=False). Weights stored as (in, out) so the kernel computes x @ w.
# The reference's self.query is unused in forward() and not materialized.
# ---------------------------------------------------------------------------
def init_params(key):
    kk, kv = jax.random.split(key)
    bound = 1.0 / (N_EMBD ** 0.5)
    wk = jax.random.uniform(kk, (N_EMBD, HEAD_SIZE), jnp.float32, -bound, bound)
    wv = jax.random.uniform(kv, (N_EMBD, HEAD_SIZE), jnp.float32, -bound, bound)
    return wk, wv


# Pure-JAX reference for a loose numerical sanity check (f32 everywhere).
def head_reference(x, wk, wv):
    k = jnp.einsum("btc,ch->bth", x, wk)
    q = k
    v = jnp.einsum("btc,ch->bth", x, wv)
    wei = jnp.einsum("bqh,bkh->bqk", q, k) * (HEAD_SIZE ** -0.5)
    T = x.shape[1]
    mask = jnp.tril(jnp.ones((T, T), bool))[None]
    wei = jnp.where(mask, wei, -jnp.inf)
    wei = jax.nn.softmax(wei, axis=-1)
    return jnp.einsum("bqk,bkh->bqh", wei, v)


if __name__ == "__main__":
    key = jax.random.PRNGKey(0)
    k_x, k_p = jax.random.split(key)

    B, T = 2, 64  # T <= block_size (256)
    x = jax.random.normal(k_x, (B, T, N_EMBD), jnp.float32)
    wk, wv = init_params(k_p)

    out = jax.jit(head_forward)(x, wk, wv)
    out = jax.block_until_ready(out)

    assert out.shape == (B, T, HEAD_SIZE), out.shape
    assert jnp.all(jnp.isfinite(out))

    # loose tolerance: kernel feeds bf16 to the MXU (f32 accumulation)
    ref = head_reference(x, wk, wv)
    max_err = float(jnp.max(jnp.abs(out - ref)))
    assert max_err < 5e-2, f"max abs error vs f32 reference: {max_err}"

    print("KERNEL_OK")
</pallas_src>

<mosaic_0001>
module attributes {stable_mosaic.version = 11 : i64} {
  func.func @head_kernel(%arg0: i32, %arg1: memref<2x64x384xf32, #tpu.memory_space<vmem>>, %arg2: memref<384x64xf32, #tpu.memory_space<vmem>>, %arg3: memref<384x64xf32, #tpu.memory_space<vmem>>, %arg4: memref<2x64x64xf32, #tpu.memory_space<vmem>>) attributes {dimension_semantics = [#tpu.dimension_semantics<parallel>], iteration_bounds = array<i64: 1>, scalar_prefetch = 0 : i64, scratch_operands = 0 : i64, tpu.core_type = #tpu.core_type<tc>, window_params = [{transform_indices = @transform_0, window_bounds = array<i64: 2, 64, 384>}, {pipeline_mode = #tpu.pipeline_mode<synchronous>, transform_indices = @transform_1, window_bounds = array<i64: 384, 64>}, {pipeline_mode = #tpu.pipeline_mode<synchronous>, transform_indices = @transform_2, window_bounds = array<i64: 384, 64>}, {transform_indices = @transform_3, window_bounds = array<i64: 2, 64, 64>}]} {
    %c0 = arith.constant 0 : index
    %c0_0 = arith.constant 0 : index
    %c0_1 = arith.constant 0 : index
    %0 = vector.load %arg1[%c0, %c0_0, %c0_1] : memref<2x64x384xf32, #tpu.memory_space<vmem>>, vector<2x64x384xf32>
    %1 = arith.truncf %0 : vector<2x64x384xf32> to vector<2x64x384xbf16>
    %2 = vector.shape_cast %1 : vector<2x64x384xbf16> to vector<128x384xbf16>
    %c0_2 = arith.constant 0 : index
    %c0_3 = arith.constant 0 : index
    %3 = vector.load %arg2[%c0_2, %c0_3] : memref<384x64xf32, #tpu.memory_space<vmem>>, vector<384x64xf32>
    %4 = arith.truncf %3 : vector<384x64xf32> to vector<384x64xbf16>
    %c0_4 = arith.constant 0 : index
    %c0_5 = arith.constant 0 : index
    %5 = vector.load %arg3[%c0_4, %c0_5] : memref<384x64xf32, #tpu.memory_space<vmem>>, vector<384x64xf32>
    %6 = arith.truncf %5 : vector<384x64xf32> to vector<384x64xbf16>
    %cst = arith.constant dense<0.000000e+00> : vector<128x64xf32>
    %7 = tpu.matmul %2, %4, %cst {dimension_numbers = #tpu.dot_dimension_numbers<[1], [0], [0], [1], [0, 0, 1, 1], [], []>} : vector<128x384xbf16>, vector<384x64xbf16>, vector<128x64xf32> -> vector<128x64xf32>
    %8 = vector.shape_cast %7 : vector<128x64xf32> to vector<2x64x64xf32>
    %cst_6 = arith.constant dense<0.000000e+00> : vector<128x64xf32>
    %9 = tpu.matmul %2, %6, %cst_6 {dimension_numbers = #tpu.dot_dimension_numbers<[1], [0], [0], [1], [0, 0, 1, 1], [], []>} : vector<128x384xbf16>, vector<384x64xbf16>, vector<128x64xf32> -> vector<128x64xf32>
    %10 = vector.shape_cast %9 : vector<128x64xf32> to vector<2x64x64xf32>
    %11 = arith.truncf %8 : vector<2x64x64xf32> to vector<2x64x64xbf16>
    %12 = arith.truncf %8 : vector<2x64x64xf32> to vector<2x64x64xbf16>
    "tpu.trace_start"() <{level = 10 : i32, message = "bqh,bkh->bqk"}> : () -> ()
    %cst_7 = arith.constant dense<0.000000e+00> : vector<2x64x64xf32>
    %13 = tpu.matmul %11, %12, %cst_7 {dimension_numbers = #tpu.dot_dimension_numbers<[2], [2], [1], [1], [0, 0, 0, 1, 1, 1], [0], [0]>} : vector<2x64x64xbf16>, vector<2x64x64xbf16>, vector<2x64x64xf32> -> vector<2x64x64xf32>
    "tpu.trace_stop"() : () -> ()
    %cst_8 = arith.constant 1.250000e-01 : f32
    %14 = vector.broadcast %cst_8 : f32 to vector<2x64x64xf32>
    %15 = arith.mulf %13, %14 : vector<2x64x64xf32>
    %16 = tpu.iota {dimensions = array<i32: 0>} : vector<64x64xi32>
    %17 = tpu.iota {dimensions = array<i32: 1>} : vector<64x64xi32>
    %18 = arith.cmpi sle, %17, %16 : vector<64x64xi32>
    %19 = vector.shape_cast %18 : vector<64x64xi1> to vector<1x64x64xi1>
    %cst_9 = arith.constant 0xFF800000 : f32
    %20 = vector.shape_cast %19 : vector<1x64x64xi1> to vector<1x64x64xi1>
    %21 = vector.broadcast %20 : vector<1x64x64xi1> to vector<2x64x64xi1>
    %22 = vector.broadcast %cst_9 : f32 to vector<2x64x64xf32>
    %23 = arith.select %21, %15, %22 : vector<2x64x64xi1>, vector<2x64x64xf32>
    %cst_10 = arith.constant dense<0xFF800000> : vector<2x64xf32>
    %24 = vector.multi_reduction <maximumf>, %23, %cst_10 [2] : vector<2x64x64xf32> to vector<2x64xf32>
    %25 = vector.shape_cast %24 : vector<2x64xf32> to vector<2x64x1xf32>
    %26 = vector.broadcast %25 : vector<2x64x1xf32> to vector<2x64x64xf32>
    %27 = arith.subf %23, %26 : vector<2x64x64xf32>
    %28 = math.exp %27 : vector<2x64x64xf32>
    %cst_11 = arith.constant dense<0.000000e+00> : vector<2x64xf32>
    %29 = vector.multi_reduction <add>, %28, %cst_11 [2] : vector<2x64x64xf32> to vector<2x64xf32>
    %30 = vector.shape_cast %29 : vector<2x64xf32> to vector<2x64x1xf32>
    %31 = vector.broadcast %30 : vector<2x64x1xf32> to vector<2x64x64xf32>
    %32 = arith.divf %28, %31 : vector<2x64x64xf32>
    %33 = arith.truncf %32 : vector<2x64x64xf32> to vector<2x64x64xbf16>
    %34 = arith.truncf %10 : vector<2x64x64xf32> to vector<2x64x64xbf16>
    "tpu.trace_start"() <{level = 10 : i32, message = "bqk,bkh->bqh"}> : () -> ()
    %cst_12 = arith.constant dense<0.000000e+00> : vector<2x64x64xf32>
    %35 = tpu.matmul %33, %34, %cst_12 {dimension_numbers = #tpu.dot_dimension_numbers<[2], [1], [1], [2], [0, 0, 0, 1, 1, 2], [0], [0]>} : vector<2x64x64xbf16>, vector<2x64x64xbf16>, vector<2x64x64xf32> -> vector<2x64x64xf32>
    "tpu.trace_stop"() : () -> ()
    %c0_13 = arith.constant 0 : index
    %c0_14 = arith.constant 0 : index
    %c0_15 = arith.constant 0 : index
    %36 = vector.load %arg4[%c0_13, %c0_14, %c0_15] : memref<2x64x64xf32, #tpu.memory_space<vmem>>, vector<2x64x64xf32>
    tpu.vector_store %arg4[%c0_13, %c0_14, %c0_15], %35 {strides = array<i32>} : memref<2x64x64xf32, #tpu.memory_space<vmem>>, vector<2x64x64xf32>,
    return
  }
  func.func @transform_0(%arg0: i32) -> (i32, i32, i32) {
    %c0_i32 = arith.constant 0 : i32
    %c0_i32_0 = arith.constant 0 : i32
    %c0_i32_1 = arith.constant 0 : i32
    return %arg0, %c0_i32, %c0_i32_0 : i32, i32, i32
  }
  func.func @transform_1(%arg0: i32) -> (i32, i32) {
    %c0_i32 = arith.constant 0 : i32
    %c0_i32_0 = arith.constant 0 : i32
    %c0_i32_1 = arith.constant 0 : i32
    return %c0_i32, %c0_i32_0 : i32, i32
  }
  func.func @transform_2(%arg0: i32) -> (i32, i32) {
    %c0_i32 = arith.constant 0 : i32
    %c0_i32_0 = arith.constant 0 : i32
    %c0_i32_1 = arith.constant 0 : i32
    return %c0_i32, %c0_i32_0 : i32, i32
  }
  func.func @transform_3(%arg0: i32) -> (i32, i32, i32) {
    %c0_i32 = arith.constant 0 : i32
    %c0_i32_0 = arith.constant 0 : i32
    %c0_i32_1 = arith.constant 0 : i32
    return %arg0, %c0_i32, %c0_i32_0 : i32, i32, i32
  }
}

</mosaic_0001>

<llo_original>
// kernel: head_forward.1
$region0: #{head_forward.1}
  #allocation0 [shape = 'u32[]', space=smem, size = 0x4, offset = 0x4, fixed_abs, tag = 'smem constant byte address 0x4 - core index']
  #allocation1 [shape = 'u32[72,128]{1,0:T(1,128)}', space=vmem, size = 0x9000, scoped, tag = 'internal scratch']
  %s0 = inlined_call_operand.vmem [shape: f32[2,64,384], index: 0, kind: input, shape index: {}]
  %s1 = inlined_call_operand.vmem [shape: f32[384,64], index: 1, kind: input, shape index: {}]
  %s2 = inlined_call_operand.vmem [shape: f32[384,64], index: 2, kind: input, shape index: {}]
  %s3 = inlined_call_operand.hbm [shape: f32[2,64,64], index: 3, kind: output, shape index: {}]
  %s4 = sld [smem:[#allocation0]]
  $region22: #{head_forward.1} parent=0
    _
  %s6 = ssub.s32 1, %s4
  %s7 = scalar_select 0, %s6, %s4
  $region1: #{head_forward.1} parent=0
    #allocation2 [shape = 'u8[65536]{0}', space=vmem, size = 0x10000, scoped, tag = 'output window, operand 0, single buffered']
    #allocation3 [shape = 's32[1]{0}', space=sflag, size = 0x4, scoped, tag = 'scoped memory for head_forward.1']
    %8 = vsyncpa [#allocation3], 0
    // Predicated region
    $region2: #{head_forward.1} parent=1 // pred_check
      _
    $region3: #{head_forward.1} parent=1 // pred_check_branch
      %10 = sbr.rel (0) target = $region5
    $region4: #{head_forward.1} parent=1 // pred_region
      _
    $region5: #{head_forward.1} parent=1 // pred_fallthru
      _
    // Predicated region
    $region6: #{head_forward.1} parent=1 // pred_check
      _
    $region7: #{head_forward.1} parent=1 // pred_check_branch
      %12 = sbr.rel (0) target = $region9
    $region8: #{head_forward.1} parent=1 // pred_region
      _
    $region9: #{head_forward.1} parent=1 // pred_fallthru
      _
    // Predicated region
    $region10: #{head_forward.1} parent=1 // pred_check
      _
    $region11: #{head_forward.1} parent=1 // pred_check_branch
      %14 = sbr.rel (0) target = $region13
    $region12: #{head_forward.1} parent=1 // pred_region
      _
    $region13: #{head_forward.1} parent=1 // pred_fallthru
      _
    %v16 = vld [vmem:[%s0] sm:$0xff]
    %v17 = vld [vmem:[%s0 + $0x8] sm:$0xff]
    %v18 = vld [vmem:[%s0 + $0x10] sm:$0xff]
    %v19 = vld [vmem:[%s0 + $0x18] sm:$0xff]
    %v20 = vld [vmem:[%s0 + $0x20] sm:$0xff]
    %v21 = vld [vmem:[%s0 + $0x28] sm:$0xff]
    %v22 = vld [vmem:[%s0 + $0x30] sm:$0xff]
    %v23 = vld [vmem:[%s0 + $0x38] sm:$0xff]
    %v24 = vld [vmem:[%s0 + $0x40] sm:$0xff]
    %v25 = vld [vmem:[%s0 + $0x48] sm:$0xff]
    %v26 = vld [vmem:[%s0 + $0x50] sm:$0xff]
    %v27 = vld [vmem:[%s0 + $0x58] sm:$0xff]
    %v28 = vld [vmem:[%s0 + $0x60] sm:$0xff]
    %v29 = vld [vmem:[%s0 + $0x68] sm:$0xff]
    %v30 = vld [vmem:[%s0 + $0x70] sm:$0xff]
    %v31 = vld [vmem:[%s0 + $0x78] sm:$0xff]
    %v32 = vld [vmem:[%s0 + $0x80] sm:$0xff]
    %v33 = vld [vmem:[%s0 + $0x88] sm:$0xff]
    %v34 = vld [vmem:[%s0 + $0x90] sm:$0xff]
    %v35 = vld [vmem:[%s0 + $0x98] sm:$0xff]
    %v36 = vld [vmem:[%s0 + $0xa0] sm:$0xff]
    %v37 = vld [vmem:[%s0 + $0xa8] sm:$0xff]
    %v38 = vld [vmem:[%s0 + $0xb0] sm:$0xff]
    %v39 = vld [vmem:[%s0 + $0xb8] sm:$0xff]
    %v40 = vld [vmem:[%s0 + $0xc0] sm:$0xff]
    %v41 = vld [vmem:[%s0 + $0xc8] sm:$0xff]
    %v42 = vld [vmem:[%s0 + $0xd0] sm:$0xff]
    %v43 = vld [vmem:[%s0 + $0xd8] sm:$0xff]
    %v44 = vld [vmem:[%s0 + $0xe0] sm:$0xff]
    %v45 = vld [vmem:[%s0 + $0xe8] sm:$0xff]
    %v46 = vld [vmem:[%s0 + $0xf0] sm:$0xff]
    %v47 = vld [vmem:[%s0 + $0xf8] sm:$0xff]
    %v48 = vld [vmem:[%s0 + $0x100] sm:$0xff]
    %v49 = vld [vmem:[%s0 + $0x108] sm:$0xff]
    %v50 = vld [vmem:[%s0 + $0x110] sm:$0xff]
    %v51 = vld [vmem:[%s0 + $0x118] sm:$0xff]
    %v52 = vld [vmem:[%s0 + $0x120] sm:$0xff]
    %v53 = vld [vmem:[%s0 + $0x128] sm:$0xff]
    %v54 = vld [vmem:[%s0 + $0x130] sm:$0xff]
    %v55 = vld [vmem:[%s0 + $0x138] sm:$0xff]
    %v56 = vld [vmem:[%s0 + $0x140] sm:$0xff]
    %v57 = vld [vmem:[%s0 + $0x148] sm:$0xff]
    %v58 = vld [vmem:[%s0 + $0x150] sm:$0xff]
    %v59 = vld [vmem:[%s0 + $0x158] sm:$0xff]
    %v60 = vld [vmem:[%s0 + $0x160] sm:$0xff]
    %v61 = vld [vmem:[%s0 + $0x168] sm:$0xff]
    %v62 = vld [vmem:[%s0 + $0x170] sm:$0xff]
    %v63 = vld [vmem:[%s0 + $0x178] sm:$0xff]
    %v64 = vpack.c.bf16 %v17, %v16
    %v65 = vpack.c.bf16 %v18, %v18
    %v66 = vpack.c.bf16 %v20, %v19
    %v67 = vpack.c.bf16 %v21, %v21
    %v68 = vpack.c.bf16 %v23, %v22
    %v69 = vpack.c.bf16 %v24, %v24
    %v70 = vpack.c.bf16 %v26, %v25
    %v71 = vpack.c.bf16 %v27, %v27
    %v72 = vpack.c.bf16 %v29, %v28
    %v73 = vpack.c.bf16 %v30, %v30
    %v74 = vpack.c.bf16 %v32, %v31
    %v75 = vpack.c.bf16 %v33, %v33
    %v76 = vpack.c.bf16 %v35, %v34
    %v77 = vpack.c.bf16 %v36, %v36
    %v78 = vpack.c.bf16 %v38, %v37
    %v79 = vpack.c.bf16 %v39, %v39
    %v80 = vpack.c.bf16 %v41, %v40
    %v81 = vpack.c.bf16 %v42, %v42
    %v82 = vpack.c.bf16 %v44, %v43
    %v83 = vpack.c.bf16 %v45, %v45
    %v84 = vpack.c.bf16 %v47, %v46
    %v85 = vpack.c.bf16 %v48, %v48
    %v86 = vpack.c.bf16 %v50, %v49
    %v87 = vpack.c.bf16 %v51, %v51
    %v88 = vpack.c.bf16 %v53, %v52
    %v89 = vpack.c.bf16 %v54, %v54
    %v90 = vpack.c.bf16 %v56, %v55
    %v91 = vpack.c.bf16 %v57, %v57
    %v92 = vpack.c.bf16 %v59, %v58
    %v93 = vpack.c.bf16 %v60, %v60
    %v94 = vpack.c.bf16 %v62, %v61
    %v95 = vpack.c.bf16 %v63, %v63
    %v96 = vld [vmem:[%s1] sm:$0xff]
    %v97 = vld [vmem:[%s1 + $0x8] sm:$0xff]
    %v98 = vld [vmem:[%s1 + $0x10] sm:$0xff]
    %v99 = vld [vmem:[%s1 + $0x18] sm:$0xff]
    %v100 = vld [vmem:[%s1 + $0x20] sm:$0xff]
    %v101 = vld [vmem:[%s1 + $0x28] sm:$0xff]
    %v102 = vld [vmem:[%s1 + $0x30] sm:$0xff]
    %v103 = vld [vmem:[%s1 + $0x38] sm:$0xff]
    %v104 = vld [vmem:[%s1 + $0x40] sm:$0xff]
    %v105 = vld [vmem:[%s1 + $0x48] sm:$0xff]
    %v106 = vld [vmem:[%s1 + $0x50] sm:$0xff]
    %v107 = vld [vmem:[%s1 + $0x58] sm:$0xff]
    %v108 = vld [vmem:[%s1 + $0x60] sm:$0xff]
    %v109 = vld [vmem:[%s1 + $0x68] sm:$0xff]
    %v110 = vld [vmem:[%s1 + $0x70] sm:$0xff]
    %v111 = vld [vmem:[%s1 + $0x78] sm:$0xff]
    %v112 = vld [vmem:[%s1 + $0x80] sm:$0xff]
    %v113 = vld [vmem:[%s1 + $0x88] sm:$0xff]
    %v114 = vld [vmem:[%s1 + $0x90] sm:$0xff]
    %v115 = vld [vmem:[%s1 + $0x98] sm:$0xff]
    %v116 = vld [vmem:[%s1 + $0xa0] sm:$0xff]
    %v117 = vld [vmem:[%s1 + $0xa8] sm:$0xff]
    %v118 = vld [vmem:[%s1 + $0xb0] sm:$0xff]
    %v119 = vld [vmem:[%s1 + $0xb8] sm:$0xff]
    %v120 = vld [vmem:[%s1 + $0xc0] sm:$0xff]
    %v121 = vld [vmem:[%s1 + $0xc8] sm:$0xff]
    %v122 = vld [vmem:[%s1 + $0xd0] sm:$0xff]
    %v123 = vld [vmem:[%s1 + $0xd8] sm:$0xff]
    %v124 = vld [vmem:[%s1 + $0xe0] sm:$0xff]
    %v125 = vld [vmem:[%s1 + $0xe8] sm:$0xff]
    %v126 = vld [vmem:[%s1 + $0xf0] sm:$0xff]
    %v127 = vld [vmem:[%s1 + $0xf8] sm:$0xff]
    %v128 = vld [vmem:[%s1 + $0x100] sm:$0xff]
    %v129 = vld [vmem:[%s1 + $0x108] sm:$0xff]
    %v130 = vld [vmem:[%s1 + $0x110] sm:$0xff]
    %v131 = vld [vmem:[%s1 + $0x118] sm:$0xff]
    %v132 = vld [vmem:[%s1 + $0x120] sm:$0xff]
    %v133 = vld [vmem:[%s1 + $0x128] sm:$0xff]
    %v134 = vld [vmem:[%s1 + $0x130] sm:$0xff]
    %v135 = vld [vmem:[%s1 + $0x138] sm:$0xff]
    %v136 = vld [vmem:[%s1 + $0x140] sm:$0xff]
    %v137 = vld [vmem:[%s1 + $0x148] sm:$0xff]
    %v138 = vld [vmem:[%s1 + $0x150] sm:$0xff]
    %v139 = vld [vmem:[%s1 + $0x158] sm:$0xff]
    %v140 = vld [vmem:[%s1 + $0x160] sm:$0xff]
    %v141 = vld [vmem:[%s1 + $0x168] sm:$0xff]
    %v142 = vld [vmem:[%s1 + $0x170] sm:$0xff]
    %v143 = vld [vmem:[%s1 + $0x178] sm:$0xff]
    %v144 = vpack.c.bf16 %v97, %v96
    %v145 = vpack.c.bf16 %v99, %v98
    %v146 = vpack.c.bf16 %v101, %v100
    %v147 = vpack.c.bf16 %v103, %v102
    %v148 = vpack.c.bf16 %v105, %v104
    %v149 = vpack.c.bf16 %v107, %v106
    %v150 = vpack.c.bf16 %v109, %v108
    %v151 = vpack.c.bf16 %v111, %v110
    %v152 = vpack.c.bf16 %v113, %v112
    %v153 = vpack.c.bf16 %v115, %v114
    %v154 = vpack.c.bf16 %v117, %v116
    %v155 = vpack.c.bf16 %v119, %v118
    %v156 = vpack.c.bf16 %v121, %v120
    %v157 = vpack.c.bf16 %v123, %v122
    %v158 = vpack.c.bf16 %v125, %v124
    %v159 = vpack.c.bf16 %v127, %v126
    %v160 = vpack.c.bf16 %v129, %v128
    %v161 = vpack.c.bf16 %v131, %v130
    %v162 = vpack.c.bf16 %v133, %v132
    %v163 = vpack.c.bf16 %v135, %v134
    %v164 = vpack.c.bf16 %v137, %v136
    %v165 = vpack.c.bf16 %v139, %v138
    %v166 = vpack.c.bf16 %v141, %v140
    %v167 = vpack.c.bf16 %v143, %v142
    %v168 = vld [vmem:[%s2] sm:$0xff]
    %v169 = vld [vmem:[%s2 + $0x8] sm:$0xff]
    %v170 = vld [vmem:[%s2 + $0x10] sm:$0xff]
    %v171 = vld [vmem:[%s2 + $0x18] sm:$0xff]
    %v172 = vld [vmem:[%s2 + $0x20] sm:$0xff]
    %v173 = vld [vmem:[%s2 + $0x28] sm:$0xff]
    %v174 = vld [vmem:[%s2 + $0x30] sm:$0xff]
    %v175 = vld [vmem:[%s2 + $0x38] sm:$0xff]
    %v176 = vld [vmem:[%s2 + $0x40] sm:$0xff]
    %v177 = vld [vmem:[%s2 + $0x48] sm:$0xff]
    %v178 = vld [vmem:[%s2 + $0x50] sm:$0xff]
    %v179 = vld [vmem:[%s2 + $0x58] sm:$0xff]
    %v180 = vld [vmem:[%s2 + $0x60] sm:$0xff]
    %v181 = vld [vmem:[%s2 + $0x68] sm:$0xff]
    %v182 = vld [vmem:[%s2 + $0x70] sm:$0xff]
    %v183 = vld [vmem:[%s2 + $0x78] sm:$0xff]
    %v184 = vld [vmem:[%s2 + $0x80] sm:$0xff]
    %v185 = vld [vmem:[%s2 + $0x88] sm:$0xff]
    %v186 = vld [vmem:[%s2 + $0x90] sm:$0xff]
    %v187 = vld [vmem:[%s2 + $0x98] sm:$0xff]
    %v188 = vld [vmem:[%s2 + $0xa0] sm:$0xff]
    %v189 = vld [vmem:[%s2 + $0xa8] sm:$0xff]
    %v190 = vld [vmem:[%s2 + $0xb0] sm:$0xff]
    %v191 = vld [vmem:[%s2 + $0xb8] sm:$0xff]
    %v192 = vld [vmem:[%s2 + $0xc0] sm:$0xff]
    %v193 = vld [vmem:[%s2 + $0xc8] sm:$0xff]
    %v194 = vld [vmem:[%s2 + $0xd0] sm:$0xff]
    %v195 = vld [vmem:[%s2 + $0xd8] sm:$0xff]
    %v196 = vld [vmem:[%s2 + $0xe0] sm:$0xff]
    %v197 = vld [vmem:[%s2 + $0xe8] sm:$0xff]
    %v198 = vld [vmem:[%s2 + $0xf0] sm:$0xff]
    %v199 = vld [vmem:[%s2 + $0xf8] sm:$0xff]
    %v200 = vld [vmem:[%s2 + $0x100] sm:$0xff]
    %v201 = vld [vmem:[%s2 + $0x108] sm:$0xff]
    %v202 = vld [vmem:[%s2 + $0x110] sm:$0xff]
    %v203 = vld [vmem:[%s2 + $0x118] sm:$0xff]
    %v204 = vld [vmem:[%s2 + $0x120] sm:$0xff]
    %v205 = vld [vmem:[%s2 + $0x128] sm:$0xff]
    %v206 = vld [vmem:[%s2 + $0x130] sm:$0xff]
    %v207 = vld [vmem:[%s2 + $0x138] sm:$0xff]
    %v208 = vld [vmem:[%s2 + $0x140] sm:$0xff]
    %v209 = vld [vmem:[%s2 + $0x148] sm:$0xff]
    %v210 = vld [vmem:[%s2 + $0x150] sm:$0xff]
    %v211 = vld [vmem:[%s2 + $0x158] sm:$0xff]
    %v212 = vld [vmem:[%s2 + $0x160] sm:$0xff]
    %v213 = vld [vmem:[%s2 + $0x168] sm:$0xff]
    %v214 = vld [vmem:[%s2 + $0x170] sm:$0xff]
    %v215 = vld [vmem:[%s2 + $0x178] sm:$0xff]
    %v216 = vpack.c.bf16 %v169, %v168
    %v217 = vpack.c.bf16 %v171, %v170
    %v218 = vpack.c.bf16 %v173, %v172
    %v219 = vpack.c.bf16 %v175, %v174
    %v220 = vpack.c.bf16 %v177, %v176
    %v221 = vpack.c.bf16 %v179, %v178
    %v222 = vpack.c.bf16 %v181, %v180
    %v223 = vpack.c.bf16 %v183, %v182
    %v224 = vpack.c.bf16 %v185, %v184
    %v225 = vpack.c.bf16 %v187, %v186
    %v226 = vpack.c.bf16 %v189, %v188
    %v227 = vpack.c.bf16 %v191, %v190
    %v228 = vpack.c.bf16 %v193, %v192
    %v229 = vpack.c.bf16 %v195, %v194
    %v230 = vpack.c.bf16 %v197, %v196
    %v231 = vpack.c.bf16 %v199, %v198
    %v232 = vpack.c.bf16 %v201, %v200
    %v233 = vpack.c.bf16 %v203, %v202
    %v234 = vpack.c.bf16 %v205, %v204
    %v235 = vpack.c.bf16 %v207, %v206
    %v236 = vpack.c.bf16 %v209, %v208
    %v237 = vpack.c.bf16 %v211, %v210
    %v238 = vpack.c.bf16 %v213, %v212
    %v239 = vpack.c.bf16 %v215, %v214
    %v272 = vunpack.c.l.b16 %v64
    %v273 = vunpack.c.h.b16 %v64
    %v274 = vunpack.c.l.b16 %v65
    %v275 = vunpack.c.l.b16 %v66
    %v276 = vunpack.c.h.b16 %v66
    %v277 = vunpack.c.l.b16 %v67
    %v278 = vunpack.c.l.b16 %v68
    %v279 = vunpack.c.h.b16 %v68
    %v280 = vunpack.c.l.b16 %v69
    %v281 = vunpack.c.l.b16 %v70
    %v282 = vunpack.c.h.b16 %v70
    %v283 = vunpack.c.l.b16 %v71
    %v284 = vunpack.c.l.b16 %v72
    %v285 = vunpack.c.h.b16 %v72
    %v286 = vunpack.c.l.b16 %v73
    %v287 = vunpack.c.l.b16 %v74
    %v288 = vunpack.c.h.b16 %v74
    %v289 = vunpack.c.l.b16 %v75
    %v290 = vunpack.c.l.b16 %v76
    %v291 = vunpack.c.h.b16 %v76
    %v292 = vunpack.c.l.b16 %v77
    %v293 = vunpack.c.l.b16 %v78
    %v294 = vunpack.c.h.b16 %v78
    %v295 = vunpack.c.l.b16 %v79
    %v296 = vunpack.c.l.b16 %v80
    %v297 = vunpack.c.h.b16 %v80
    %v298 = vunpack.c.l.b16 %v81
    %v299 = vunpack.c.l.b16 %v82
    %v300 = vunpack.c.h.b16 %v82
    %v301 = vunpack.c.l.b16 %v83
    %v302 = vunpack.c.l.b16 %v84
    %v303 = vunpack.c.h.b16 %v84
    %v304 = vunpack.c.l.b16 %v85
    %v305 = vunpack.c.l.b16 %v86
    %v306 = vunpack.c.h.b16 %v86
    %v307 = vunpack.c.l.b16 %v87
    %v308 = vunpack.c.l.b16 %v88
    %v309 = vunpack.c.h.b16 %v88
    %v310 = vunpack.c.l.b16 %v89
    %v311 = vunpack.c.l.b16 %v90
    %v312 = vunpack.c.h.b16 %v90
    %v313 = vunpack.c.l.b16 %v91
    %v314 = vunpack.c.l.b16 %v92
    %v315 = vunpack.c.h.b16 %v92
    %v316 = vunpack.c.l.b16 %v93
    %v317 = vunpack.c.l.b16 %v94
    %v318 = vunpack.c.h.b16 %v94
    %v319 = vunpack.c.l.b16 %v95
    %v320 = vpack.c.b16 %v275, %v272
    %v321 = vpack.c.b16 %v276, %v273
    %v322 = vpack.c.b16 %v277, %v274
    %v323 = vpack.c.b16 %v281, %v278
    %v324 = vpack.c.b16 %v282, %v279
    %v325 = vpack.c.b16 %v283, %v280
    %v326 = vpack.c.b16 %v287, %v284
    %v327 = vpack.c.b16 %v288, %v285
    %v328 = vpack.c.b16 %v289, %v286
    %v329 = vpack.c.b16 %v293, %v290
    %v330 = vpack.c.b16 %v294, %v291
    %v331 = vpack.c.b16 %v295, %v292
    %v332 = vpack.c.b16 %v299, %v296
    %v333 = vpack.c.b16 %v300, %v297
    %v334 = vpack.c.b16 %v301, %v298
    %v335 = vpack.c.b16 %v305, %v302
    %v336 = vpack.c.b16 %v306, %v303
    %v337 = vpack.c.b16 %v307, %v304
    %v338 = vpack.c.b16 %v311, %v308
    %v339 = vpack.c.b16 %v312, %v309
    %v340 = vpack.c.b16 %v313, %v310
    %v341 = vpack.c.b16 %v317, %v314
    %v342 = vpack.c.b16 %v318, %v315
    %v343 = vpack.c.b16 %v319, %v316
    %368 = vmatpush.bf16.msra.mxu0 %v151
    %369 = vmatpush.bf16.msra.mxu0 %v150
    %370 = vmatpush.bf16.msra.mxu0 %v149
    %371 = vmatpush.bf16.msra.mxu0 %v148
    %372 = vmatpush.bf16.msra.mxu0 %v147
    %373 = vmatpush.bf16.msra.mxu0 %v146
    %374 = vmatpush.bf16.msra.mxu0 %v145
    %375 = vmatpush.bf16.msra.mxu0 %v144
    %376 = vmatmul.bf16.gmra.mxu0 %v320
    %v377 = vpop.f32.mrf.mxu0
    %v378 = vadd.f32 0.0, %v377
    %v379 = vpop.f32.mrf.mxu0
    %v380 = vadd.f32 0.0, %v379
    %381 = vmatmul.bf16.gmra.mxu0 %v323
    %v382 = vpop.f32.mrf.mxu0
    %v383 = vadd.f32 0.0, %v382
    %v384 = vpop.f32.mrf.mxu0
    %v385 = vadd.f32 0.0, %v384
    %386 = vmatmul.bf16.gmra.mxu0 %v326
    %v387 = vpop.f32.mrf.mxu0
    %v388 = vadd.f32 0.0, %v387
    %v389 = vpop.f32.mrf.mxu0
    %v390 = vadd.f32 0.0, %v389
    %391 = vmatmul.bf16.gmra.mxu0 %v329
    %v392 = vpop.f32.mrf.mxu0
    %v393 = vadd.f32 0.0, %v392
    %v394 = vpop.f32.mrf.mxu0
    %v395 = vadd.f32 0.0, %v394
    %396 = vmatmul.bf16.gmra.mxu0 %v332
    %v397 = vpop.f32.mrf.mxu0
    %v398 = vadd.f32 0.0, %v397
    %v399 = vpop.f32.mrf.mxu0
    %v400 = vadd.f32 0.0, %v399
    %401 = vmatmul.bf16.gmra.mxu0 %v335
    %v402 = vpop.f32.mrf.mxu0
    %v403 = vadd.f32 0.0, %v402
    %v404 = vpop.f32.mrf.mxu0
    %v405 = vadd.f32 0.0, %v404
    %406 = vmatmul.bf16.gmra.mxu0 %v338
    %v407 = vpop.f32.mrf.mxu0
    %v408 = vadd.f32 0.0, %v407
    %v409 = vpop.f32.mrf.mxu0
    %v410 = vadd.f32 0.0, %v409
    %411 = vmatmul.bf16.gmra.mxu0 %v341
    %v412 = vpop.f32.mrf.mxu0
    %v413 = vadd.f32 0.0, %v412
    %v414 = vpop.f32.mrf.mxu0
    %v415 = vadd.f32 0.0, %v414
    %416 = vdwg.mxu0
    %417 = vmatpush.bf16.msra.mxu0 %v159
    %418 = vmatpush.bf16.msra.mxu0 %v158
    %419 = vmatpush.bf16.msra.mxu0 %v157
    %420 = vmatpush.bf16.msra.mxu0 %v156
    %421 = vmatpush.bf16.msra.mxu0 %v155
    %422 = vmatpush.bf16.msra.mxu0 %v154
    %423 = vmatpush.bf16.msra.mxu0 %v153
    %424 = vmatpush.bf16.msra.mxu0 %v152
    %425 = vmatmul.bf16.gmra.mxu0 %v321
    %v426 = vpop.f32.mrf.mxu0
    %v427 = vadd.f32 %v378, %v426
    %v428 = vpop.f32.mrf.mxu0
    %v429 = vadd.f32 %v380, %v428
    %430 = vmatmul.bf16.gmra.mxu0 %v324
    %v431 = vpop.f32.mrf.mxu0
    %v432 = vadd.f32 %v383, %v431
    %v433 = vpop.f32.mrf.mxu0
    %v434 = vadd.f32 %v385, %v433
    %435 = vmatmul.bf16.gmra.mxu0 %v327
    %v436 = vpop.f32.mrf.mxu0
    %v437 = vadd.f32 %v388, %v436
    %v438 = vpop.f32.mrf.mxu0
    %v439 = vadd.f32 %v390, %v438
    %440 = vmatmul.bf16.gmra.mxu0 %v330
    %v441 = vpop.f32.mrf.mxu0
    %v442 = vadd.f32 %v393, %v441
    %v443 = vpop.f32.mrf.mxu0
    %v444 = vadd.f32 %v395, %v443
    %445 = vmatmul.bf16.gmra.mxu0 %v333
    %v446 = vpop.f32.mrf.mxu0
    %v447 = vadd.f32 %v398, %v446
    %v448 = vpop.f32.mrf.mxu0
    %v449 = vadd.f32 %v400, %v448
    %450 = vmatmul.bf16.gmra.mxu0 %v336
    %v451 = vpop.f32.mrf.mxu0
    %v452 = vadd.f32 %v403, %v451
    %v453 = vpop.f32.mrf.mxu0
    %v454 = vadd.f32 %v405, %v453
    %455 = vmatmul.bf16.gmra.mxu0 %v339
    %v456 = vpop.f32.mrf.mxu0
    %v457 = vadd.f32 %v408, %v456
    %v458 = vpop.f32.mrf.mxu0
    %v459 = vadd.f32 %v410, %v458
    %460 = vmatmul.bf16.gmra.mxu0 %v342
    %v461 = vpop.f32.mrf.mxu0
    %v462 = vadd.f32 %v413, %v461
    %v463 = vpop.f32.mrf.mxu0
    %v464 = vadd.f32 %v415, %v463
    %465 = vdwg.mxu0
    %466 = vmatpush.bf16.msra.mxu0 %v167
    %467 = vmatpush.bf16.msra.mxu0 %v166
    %468 = vmatpush.bf16.msra.mxu0 %v165
    %469 = vmatpush.bf16.msra.mxu0 %v164
    %470 = vmatpush.bf16.msra.mxu0 %v163
    %471 = vmatpush.bf16.msra.mxu0 %v162
    %472 = vmatpush.bf16.msra.mxu0 %v161
    %473 = vmatpush.bf16.msra.mxu0 %v160
    %474 = vmatmul.bf16.gmra.mxu0 %v322
    %v475 = vpop.f32.mrf.mxu0
    %v476 = vadd.f32 %v427, %v475
    %v477 = vpop.f32.mrf.mxu0
    %v478 = vadd.f32 %v429, %v477
    %479 = vmatmul.bf16.gmra.mxu0 %v325
    %v480 = vpop.f32.mrf.mxu0
    %v481 = vadd.f32 %v432, %v480
    %v482 = vpop.f32.mrf.mxu0
    %v483 = vadd.f32 %v434, %v482
    %484 = vmatmul.bf16.gmra.mxu0 %v328
    %v485 = vpop.f32.mrf.mxu0
    %v486 = vadd.f32 %v437, %v485
    %v487 = vpop.f32.mrf.mxu0
    %v488 = vadd.f32 %v439, %v487
    %489 = vmatmul.bf16.gmra.mxu0 %v331
    %v490 = vpop.f32.mrf.mxu0
    %v491 = vadd.f32 %v442, %v490
    %v492 = vpop.f32.mrf.mxu0
    %v493 = vadd.f32 %v444, %v492
    %494 = vmatmul.bf16.gmra.mxu0 %v334
    %v495 = vpop.f32.mrf.mxu0
    %v496 = vadd.f32 %v447, %v495
    %v497 = vpop.f32.mrf.mxu0
    %v498 = vadd.f32 %v449, %v497
    %499 = vmatmul.bf16.gmra.mxu0 %v337
    %v500 = vpop.f32.mrf.mxu0
    %v501 = vadd.f32 %v452, %v500
    %v502 = vpop.f32.mrf.mxu0
    %v503 = vadd.f32 %v454, %v502
    %504 = vmatmul.bf16.gmra.mxu0 %v340
    %v505 = vpop.f32.mrf.mxu0
    %v506 = vadd.f32 %v457, %v505
    %v507 = vpop.f32.mrf.mxu0
    %v508 = vadd.f32 %v459, %v507
    %509 = vmatmul.bf16.gmra.mxu0 %v343
    %v510 = vpop.f32.mrf.mxu0
    %v511 = vadd.f32 %v462, %v510
    %v512 = vpop.f32.mrf.mxu0
    %v513 = vadd.f32 %v464, %v512
    %514 = vdwg.mxu0
    %515 = vmatpush.bf16.msra.mxu0 %v223
    %516 = vmatpush.bf16.msra.mxu0 %v222
    %517 = vmatpush.bf16.msra.mxu0 %v221
    %518 = vmatpush.bf16.msra.mxu0 %v220
    %519 = vmatpush.bf16.msra.mxu0 %v219
    %520 = vmatpush.bf16.msra.mxu0 %v218
    %521 = vmatpush.bf16.msra.mxu0 %v217
    %522 = vmatpush.bf16.msra.mxu0 %v216
    %523 = vmatmul.bf16.gmra.mxu0 %v320
    %v524 = vpop.f32.mrf.mxu0
    %v525 = vadd.f32 0.0, %v524
    %v526 = vpop.f32.mrf.mxu0
    %v527 = vadd.f32 0.0, %v526
    %528 = vmatmul.bf16.gmra.mxu0 %v323
    %v529 = vpop.f32.mrf.mxu0
    %v530 = vadd.f32 0.0, %v529
    %v531 = vpop.f32.mrf.mxu0
    %v532 = vadd.f32 0.0, %v531
    %533 = vmatmul.bf16.gmra.mxu0 %v326
    %v534 = vpop.f32.mrf.mxu0
    %v535 = vadd.f32 0.0, %v534
    %v536 = vpop.f32.mrf.mxu0
    %v537 = vadd.f32 0.0, %v536
    %538 = vmatmul.bf16.gmra.mxu0 %v329
    %v539 = vpop.f32.mrf.mxu0
    %v540 = vadd.f32 0.0, %v539
    %v541 = vpop.f32.mrf.mxu0
    %v542 = vadd.f32 0.0, %v541
    %543 = vmatmul.bf16.gmra.mxu0 %v332
    %v544 = vpop.f32.mrf.mxu0
    %v545 = vadd.f32 0.0, %v544
    %v546 = vpop.f32.mrf.mxu0
    %v547 = vadd.f32 0.0, %v546
    %548 = vmatmul.bf16.gmra.mxu0 %v335
    %v549 = vpop.f32.mrf.mxu0
    %v550 = vadd.f32 0.0, %v549
    %v551 = vpop.f32.mrf.mxu0
    %v552 = vadd.f32 0.0, %v551
    %553 = vmatmul.bf16.gmra.mxu0 %v338
    %v554 = vpop.f32.mrf.mxu0
    %v555 = vadd.f32 0.0, %v554
    %v556 = vpop.f32.mrf.mxu0
    %v557 = vadd.f32 0.0, %v556
    %558 = vmatmul.bf16.gmra.mxu0 %v341
    %v559 = vpop.f32.mrf.mxu0
    %v560 = vadd.f32 0.0, %v559
    %v561 = vpop.f32.mrf.mxu0
    %v562 = vadd.f32 0.0, %v561
    %563 = vdwg.mxu0
    %564 = vmatpush.bf16.msra.mxu0 %v231
    %565 = vmatpush.bf16.msra.mxu0 %v230
    %566 = vmatpush.bf16.msra.mxu0 %v229
    %567 = vmatpush.bf16.msra.mxu0 %v228
    %568 = vmatpush.bf16.msra.mxu0 %v227
    %569 = vmatpush.bf16.msra.mxu0 %v226
    %570 = vmatpush.bf16.msra.mxu0 %v225
    %571 = vmatpush.bf16.msra.mxu0 %v224
    %572 = vmatmul.bf16.gmra.mxu0 %v321
    %v573 = vpop.f32.mrf.mxu0
    %v574 = vadd.f32 %v525, %v573
    %v575 = vpop.f32.mrf.mxu0
    %v576 = vadd.f32 %v527, %v575
    %577 = vmatmul.bf16.gmra.mxu0 %v324
    %v578 = vpop.f32.mrf.mxu0
    %v579 = vadd.f32 %v530, %v578
    %v580 = vpop.f32.mrf.mxu0
    %v581 = vadd.f32 %v532, %v580
    %582 = vmatmul.bf16.gmra.mxu0 %v327
    %v583 = vpop.f32.mrf.mxu0
    %v584 = vadd.f32 %v535, %v583
    %v585 = vpop.f32.mrf.mxu0
    %v586 = vadd.f32 %v537, %v585
    %587 = vmatmul.bf16.gmra.mxu0 %v330
    %v588 = vpop.f32.mrf.mxu0
    %v589 = vadd.f32 %v540, %v588
    %v590 = vpop.f32.mrf.mxu0
    %v591 = vadd.f32 %v542, %v590
    %592 = vmatmul.bf16.gmra.mxu0 %v333
    %v593 = vpop.f32.mrf.mxu0
    %v594 = vadd.f32 %v545, %v593
    %v595 = vpop.f32.mrf.mxu0
    %v596 = vadd.f32 %v547, %v595
    %597 = vmatmul.bf16.gmra.mxu0 %v336
    %v598 = vpop.f32.mrf.mxu0
    %v599 = vadd.f32 %v550, %v598
    %v600 = vpop.f32.mrf.mxu0
    %v601 = vadd.f32 %v552, %v600
    %602 = vmatmul.bf16.gmra.mxu0 %v339
    %v603 = vpop.f32.mrf.mxu0
    %v604 = vadd.f32 %v555, %v603
    %v605 = vpop.f32.mrf.mxu0
    %v606 = vadd.f32 %v557, %v605
    %607 = vmatmul.bf16.gmra.mxu0 %v342
    %v608 = vpop.f32.mrf.mxu0
    %v609 = vadd.f32 %v560, %v608
    %v610 = vpop.f32.mrf.mxu0
    %v611 = vadd.f32 %v562, %v610
    %612 = vdwg.mxu0
    %613 = vmatpush.bf16.msra.mxu0 %v239
    %614 = vmatpush.bf16.msra.mxu0 %v238
    %615 = vmatpush.bf16.msra.mxu0 %v237
    %616 = vmatpush.bf16.msra.mxu0 %v236
    %617 = vmatpush.bf16.msra.mxu0 %v235
    %618 = vmatpush.bf16.msra.mxu0 %v234
    %619 = vmatpush.bf16.msra.mxu0 %v233
    %620 = vmatpush.bf16.msra.mxu0 %v232
    %621 = vmatmul.bf16.gmra.mxu0 %v322
    %v622 = vpop.f32.mrf.mxu0
    %v623 = vadd.f32 %v574, %v622
    %v624 = vpop.f32.mrf.mxu0
    %v625 = vadd.f32 %v576, %v624
    %626 = vmatmul.bf16.gmra.mxu0 %v325
    %v627 = vpop.f32.mrf.mxu0
    %v628 = vadd.f32 %v579, %v627
    %v629 = vpop.f32.mrf.mxu0
    %v630 = vadd.f32 %v581, %v629
    %631 = vmatmul.bf16.gmra.mxu0 %v328
    %v632 = vpop.f32.mrf.mxu0
    %v633 = vadd.f32 %v584, %v632
    %v634 = vpop.f32.mrf.mxu0
    %v635 = vadd.f32 %v586, %v634
    %636 = vmatmul.bf16.gmra.mxu0 %v331
    %v637 = vpop.f32.mrf.mxu0
    %v638 = vadd.f32 %v589, %v637
    %v639 = vpop.f32.mrf.mxu0
    %v640 = vadd.f32 %v591, %v639
    %641 = vmatmul.bf16.gmra.mxu0 %v334
    %v642 = vpop.f32.mrf.mxu0
    %v643 = vadd.f32 %v594, %v642
    %v644 = vpop.f32.mrf.mxu0
    %v645 = vadd.f32 %v596, %v644
    %646 = vmatmul.bf16.gmra.mxu0 %v337
    %v647 = vpop.f32.mrf.mxu0
    %v648 = vadd.f32 %v599, %v647
    %v649 = vpop.f32.mrf.mxu0
    %v650 = vadd.f32 %v601, %v649
    %651 = vmatmul.bf16.gmra.mxu0 %v340
    %v652 = vpop.f32.mrf.mxu0
    %v653 = vadd.f32 %v604, %v652
    %v654 = vpop.f32.mrf.mxu0
    %v655 = vadd.f32 %v606, %v654
    %656 = vmatmul.bf16.gmra.mxu0 %v343
    %v657 = vpop.f32.mrf.mxu0
    %v658 = vadd.f32 %v609, %v657
    %v659 = vpop.f32.mrf.mxu0
    %v660 = vadd.f32 %v611, %v659
    %661 = vdwg.mxu0
    %v662 = vpack.c.bf16 %v476, %v476
    %v663 = vpack.c.bf16 %v478, %v478
    %v664 = vpack.c.bf16 %v481, %v481
    %v665 = vpack.c.bf16 %v483, %v483
    %v666 = vpack.c.bf16 %v486, %v486
    %v667 = vpack.c.bf16 %v488, %v488
    %v668 = vpack.c.bf16 %v491, %v491
    %v669 = vpack.c.bf16 %v493, %v493
    %v670 = vpack.c.bf16 %v496, %v496
    %v671 = vpack.c.bf16 %v498, %v498
    %v672 = vpack.c.bf16 %v501, %v501
    %v673 = vpack.c.bf16 %v503, %v503
    %v674 = vpack.c.bf16 %v506, %v506
    %v675 = vpack.c.bf16 %v508, %v508
    %v676 = vpack.c.bf16 %v511, %v511
    %v677 = vpack.c.bf16 %v513, %v513
    %v686 = vunpack.c.l.b16 %v662
    %v687 = vunpack.c.l.b16 %v663
    %v688 = vunpack.c.l.b16 %v664
    %v689 = vunpack.c.l.b16 %v665
    %v690 = vunpack.c.l.b16 %v666
    %v691 = vunpack.c.l.b16 %v667
    %v692 = vunpack.c.l.b16 %v668
    %v693 = vunpack.c.l.b16 %v669
    %v694 = vpack.c.b16 %v687, %v686
    %v695 = vpack.c.b16 %v689, %v688
    %v696 = vpack.c.b16 %v691, %v690
    %v697 = vpack.c.b16 %v693, %v692
    %vm698 = vcmask 523264
    %v700 = vsel %vm698, %v694, 0
    %v703 = vsel %vm698, %v695, 0
    %v706 = vsel %vm698, %v696, 0
    %v709 = vsel %vm698, %v697, 0
    %711 = vmatpush.bf16.xpose.msra.mxu0 0
    %712 = vmatpush.bf16.xpose.msra.mxu0 0
    %713 = vmatpush.bf16.xpose.msra.mxu0 0
    %714 = vmatpush.bf16.xpose.msra.mxu0 0
    %715 = vmatpush.bf16.xpose.msra.mxu0 %v709
    %716 = vmatpush.bf16.xpose.msra.mxu0 %v706
    %717 = vmatpush.bf16.xpose.msra.mxu0 %v703
    %718 = vmatpush.bf16.xpose.msra.mxu0 %v700
    %719 = vmatmul.bf16.gmra.mxu0 %v700
    %v720 = vpop.f32.mrf.mxu0
    %v721 = vadd.f32 0.0, %v720
    %v722 = vpop.f32.mrf.mxu0
    %v723 = vadd.f32 0.0, %v722
    %724 = vmatmul.bf16.gmra.mxu0 %v703
    %v725 = vpop.f32.mrf.mxu0
    %v726 = vadd.f32 0.0, %v725
    %v727 = vpop.f32.mrf.mxu0
    %v728 = vadd.f32 0.0, %v727
    %729 = vmatmul.bf16.gmra.mxu0 %v706
    %v730 = vpop.f32.mrf.mxu0
    %v731 = vadd.f32 0.0, %v730
    %v732 = vpop.f32.mrf.mxu0
    %v733 = vadd.f32 0.0, %v732
    %734 = vmatmul.bf16.gmra.mxu0 %v709
    %v735 = vpop.f32.mrf.mxu0
    %v736 = vadd.f32 0.0, %v735
    %v737 = vpop.f32.mrf.mxu0
    %v738 = vadd.f32 0.0, %v737
    %739 = vdwg.mxu0
    %v748 = vunpack.c.l.b16 %v670
    %v749 = vunpack.c.l.b16 %v671
    %v750 = vunpack.c.l.b16 %v672
    %v751 = vunpack.c.l.b16 %v673
    %v752 = vunpack.c.l.b16 %v674
    %v753 = vunpack.c.l.b16 %v675
    %v754 = vunpack.c.l.b16 %v676
    %v755 = vunpack.c.l.b16 %v677
    %v756 = vpack.c.b16 %v749, %v748
    %v757 = vpack.c.b16 %v751, %v750
    %v758 = vpack.c.b16 %v753, %v752
    %v759 = vpack.c.b16 %v755, %v754
    %v761 = vsel %vm698, %v756, 0
    %v764 = vsel %vm698, %v757, 0
    %v767 = vsel %vm698, %v758, 0
    %v770 = vsel %vm698, %v759, 0
    %772 = vmatpush.bf16.xpose.msra.mxu0 0
    %773 = vmatpush.bf16.xpose.msra.mxu0 0
    %774 = vmatpush.bf16.xpose.msra.mxu0 0
    %775 = vmatpush.bf16.xpose.msra.mxu0 0
    %776 = vmatpush.bf16.xpose.msra.mxu0 %v770
    %777 = vmatpush.bf16.xpose.msra.mxu0 %v767
    %778 = vmatpush.bf16.xpose.msra.mxu0 %v764
    %779 = vmatpush.bf16.xpose.msra.mxu0 %v761
    %780 = vmatmul.bf16.gmra.mxu0 %v761
    %v781 = vpop.f32.mrf.mxu0
    %v782 = vadd.f32 0.0, %v781
    %v783 = vpop.f32.mrf.mxu0
    %v784 = vadd.f32 0.0, %v783
    %785 = vmatmul.bf16.gmra.mxu0 %v764
    %v786 = vpop.f32.mrf.mxu0
    %v787 = vadd.f32 0.0, %v786
    %v788 = vpop.f32.mrf.mxu0
    %v789 = vadd.f32 0.0, %v788
    %790 = vmatmul.bf16.gmra.mxu0 %v767
    %v791 = vpop.f32.mrf.mxu0
    %v792 = vadd.f32 0.0, %v791
    %v793 = vpop.f32.mrf.mxu0
    %v794 = vadd.f32 0.0, %v793
    %795 = vmatmul.bf16.gmra.mxu0 %v770
    %v796 = vpop.f32.mrf.mxu0
    %v797 = vadd.f32 0.0, %v796
    %v798 = vpop.f32.mrf.mxu0
    %v799 = vadd.f32 0.0, %v798
    %800 = vdwg.mxu0
    %v801 = vmul.f32 %v721, 0.125
    %v802 = vmul.f32 %v723, 0.125
    %v803 = vmul.f32 %v726, 0.125
    %v804 = vmul.f32 %v728, 0.125
    %v805 = vmul.f32 %v731, 0.125
    %v806 = vmul.f32 %v733, 0.125
    %v807 = vmul.f32 %v736, 0.125
    %v808 = vmul.f32 %v738, 0.125
    %v809 = vmul.f32 %v782, 0.125
    %v810 = vmul.f32 %v784, 0.125
    %v811 = vmul.f32 %v787, 0.125
    %v812 = vmul.f32 %v789, 0.125
    %v813 = vmul.f32 %v792, 0.125
    %v814 = vmul.f32 %v794, 0.125
    %v815 = vmul.f32 %v797, 0.125
    %v816 = vmul.f32 %v799, 0.125
    %v817 = vlaneseq
    %v818 = vshrl.u32 %v817, 7
    %v819 = vadd.s32 %v818, 8
    %v820 = vadd.s32 %v818, 16
    %v821 = vadd.s32 %v818, 24
    %v822 = vadd.s32 %v818, 32
    %v823 = vadd.s32 %v818, 40
    %v824 = vadd.s32 %v818, 48
    %v825 = vadd.s32 %v818, 56
    %v826 = vlaneseq
    %v827 = vand.u32 %v826, 127
    %vm828 = vcmp.le.s32.totalorder %v827, %v818
    %vm829 = vcmp.le.s32.totalorder %v827, %v819
    %vm830 = vcmp.le.s32.totalorder %v827, %v820
    %vm831 = vcmp.le.s32.totalorder %v827, %v821
    %vm832 = vcmp.le.s32.totalorder %v827, %v822
    %vm833 = vcmp.le.s32.totalorder %v827, %v823
    %vm834 = vcmp.le.s32.totalorder %v827, %v824
    %vm835 = vcmp.le.s32.totalorder %v827, %v825
    %v836 = vsel %vm828, 1, 0
    %v837 = vsel %vm829, 1, 0
    %v838 = vsel %vm830, 1, 0
    %v839 = vsel %vm831, 1, 0
    %v840 = vsel %vm832, 1, 0
    %v841 = vsel %vm833, 1, 0
    %v842 = vsel %vm834, 1, 0
    %v843 = vsel %vm835, 1, 0
    %vm844 = vcmp.eq.s32.totalorder %v836, 1
    %vm845 = vcmp.eq.s32.totalorder %v837, 1
    %vm846 = vcmp.eq.s32.totalorder %v838, 1
    %vm847 = vcmp.eq.s32.totalorder %v839, 1
    %vm848 = vcmp.eq.s32.totalorder %v840, 1
    %vm849 = vcmp.eq.s32.totalorder %v841, 1
    %vm850 = vcmp.eq.s32.totalorder %v842, 1
    %vm851 = vcmp.eq.s32.totalorder %v843, 1
    %v852 = vsel %vm844, %v801, -inf
    %v853 = vsel %vm845, %v802, -inf
    %v854 = vsel %vm846, %v803, -inf
    %v855 = vsel %vm847, %v804, -inf
    %v856 = vsel %vm848, %v805, -inf
    %v857 = vsel %vm849, %v806, -inf
    %v858 = vsel %vm850, %v807, -inf
    %v859 = vsel %vm851, %v808, -inf
    %v860 = vsel %vm844, %v809, -inf
    %v861 = vsel %vm845, %v810, -inf
    %v862 = vsel %vm846, %v811, -inf
    %v863 = vsel %vm847, %v812, -inf
    %v864 = vsel %vm848, %v813, -inf
    %v865 = vsel %vm849, %v814, -inf
    %v866 = vsel %vm850, %v815, -inf
    %v867 = vsel %vm851, %v816, -inf
    %v868 = vsel %vm698, %v852, -inf
    %869 = vmax.xlane.f32.xlu0 %v868
    %v870 = vpop.xlane.xlu0 %869
    %v871 = vsel %vm698, %v853, -inf
    %872 = vmax.xlane.f32.xlu0 %v871
    %v873 = vpop.xlane.xlu0 %872
    %v874 = vsel %vm698, %v854, -inf
    %875 = vmax.xlane.f32.xlu0 %v874
    %v876 = vpop.xlane.xlu0 %875
    %v877 = vsel %vm698, %v855, -inf
    %878 = vmax.xlane.f32.xlu0 %v877
    %v879 = vpop.xlane.xlu0 %878
    %v880 = vsel %vm698, %v856, -inf
    %881 = vmax.xlane.f32.xlu0 %v880
    %v882 = vpop.xlane.xlu0 %881
    %v883 = vsel %vm698, %v857, -inf
    %884 = vmax.xlane.f32.xlu0 %v883
    %v885 = vpop.xlane.xlu0 %884
    %v886 = vsel %vm698, %v858, -inf
    %887 = vmax.xlane.f32.xlu0 %v886
    %v888 = vpop.xlane.xlu0 %887
    %v889 = vsel %vm698, %v859, -inf
    %890 = vmax.xlane.f32.xlu0 %v889
    %v891 = vpop.xlane.xlu0 %890
    %v892 = vsel %vm698, %v860, -inf
    %893 = vmax.xlane.f32.xlu0 %v892
    %v894 = vpop.xlane.xlu0 %893
    %v895 = vsel %vm698, %v861, -inf
    %896 = vmax.xlane.f32.xlu0 %v895
    %v897 = vpop.xlane.xlu0 %896
    %v898 = vsel %vm698, %v862, -inf
    %899 = vmax.xlane.f32.xlu0 %v898
    %v900 = vpop.xlane.xlu0 %899
    %v901 = vsel %vm698, %v863, -inf
    %902 = vmax.xlane.f32.xlu0 %v901
    %v903 = vpop.xlane.xlu0 %902
    %v904 = vsel %vm698, %v864, -inf
    %905 = vmax.xlane.f32.xlu0 %v904
    %v906 = vpop.xlane.xlu0 %905
    %v907 = vsel %vm698, %v865, -inf
    %908 = vmax.xlane.f32.xlu0 %v907
    %v909 = vpop.xlane.xlu0 %908
    %v910 = vsel %vm698, %v866, -inf
    %911 = vmax.xlane.f32.xlu0 %v910
    %v912 = vpop.xlane.xlu0 %911
    %v913 = vsel %vm698, %v867, -inf
    %914 = vmax.xlane.f32.xlu0 %v913
    %v915 = vpop.xlane.xlu0 %914
    %v916 = vsub.f32 %v852, %v870
    %v917 = vsub.f32 %v853, %v873
    %v918 = vsub.f32 %v854, %v876
    %v919 = vsub.f32 %v855, %v879
    %v920 = vsub.f32 %v856, %v882
    %v921 = vsub.f32 %v857, %v885
    %v922 = vsub.f32 %v858, %v888
    %v923 = vsub.f32 %v859, %v891
    %v924 = vsub.f32 %v860, %v894
    %v925 = vsub.f32 %v861, %v897
    %v926 = vsub.f32 %v862, %v900
    %v927 = vsub.f32 %v863, %v903
    %v928 = vsub.f32 %v864, %v906
    %v929 = vsub.f32 %v865, %v909
    %v930 = vsub.f32 %v866, %v912
    %v931 = vsub.f32 %v867, %v915
    %v932 = vmul.f32 %v916, 1.442695
    %v933 = vpow.pop %v932
    %v934 = vmul.f32 %v917, 1.442695
    %v935 = vpow.pop %v934
    %v936 = vmul.f32 %v918, 1.442695
    %v937 = vpow.pop %v936
    %v938 = vmul.f32 %v919, 1.442695
    %v939 = vpow.pop %v938
    %v940 = vmul.f32 %v920, 1.442695
    %v941 = vpow.pop %v940
    %v942 = vmul.f32 %v921, 1.442695
    %v943 = vpow.pop %v942
    %v944 = vmul.f32 %v922, 1.442695
    %v945 = vpow.pop %v944
    %v946 = vmul.f32 %v923, 1.442695
    %v947 = vpow.pop %v946
    %v948 = vmul.f32 %v924, 1.442695
    %v949 = vpow.pop %v948
    %v950 = vmul.f32 %v925, 1.442695
    %v951 = vpow.pop %v950
    %v952 = vmul.f32 %v926, 1.442695
    %v953 = vpow.pop %v952
    %v954 = vmul.f32 %v927, 1.442695
    %v955 = vpow.pop %v954
    %v956 = vmul.f32 %v928, 1.442695
    %v957 = vpow.pop %v956
    %v958 = vmul.f32 %v929, 1.442695
    %v959 = vpow.pop %v958
    %v960 = vmul.f32 %v930, 1.442695
    %v961 = vpow.pop %v960
    %v962 = vmul.f32 %v931, 1.442695
    %v963 = vpow.pop %v962
    %v964 = vsel %vm698, %v933, 0.0
    %965 = vadd.xlane.f32.xlu0 %v964
    %v966 = vpop.xlane.xlu0 %965
    %v967 = vsel %vm698, %v935, 0.0
    %968 = vadd.xlane.f32.xlu0 %v967
    %v969 = vpop.xlane.xlu0 %968
    %v970 = vsel %vm698, %v937, 0.0
    %971 = vadd.xlane.f32.xlu0 %v970
    %v972 = vpop.xlane.xlu0 %971
    %v973 = vsel %vm698, %v939, 0.0
    %974 = vadd.xlane.f32.xlu0 %v973
    %v975 = vpop.xlane.xlu0 %974
    %v976 = vsel %vm698, %v941, 0.0
    %977 = vadd.xlane.f32.xlu0 %v976
    %v978 = vpop.xlane.xlu0 %977
    %v979 = vsel %vm698, %v943, 0.0
    %980 = vadd.xlane.f32.xlu0 %v979
    %v981 = vpop.xlane.xlu0 %980
    %v982 = vsel %vm698, %v945, 0.0
    %983 = vadd.xlane.f32.xlu0 %v982
    %v984 = vpop.xlane.xlu0 %983
    %v985 = vsel %vm698, %v947, 0.0
    %986 = vadd.xlane.f32.xlu0 %v985
    %v987 = vpop.xlane.xlu0 %986
    %v988 = vsel %vm698, %v949, 0.0
    %989 = vadd.xlane.f32.xlu0 %v988
    %v990 = vpop.xlane.xlu0 %989
    %v991 = vsel %vm698, %v951, 0.0
    %992 = vadd.xlane.f32.xlu0 %v991
    %v993 = vpop.xlane.xlu0 %992
    %v994 = vsel %vm698, %v953, 0.0
    %995 = vadd.xlane.f32.xlu0 %v994
    %v996 = vpop.xlane.xlu0 %995
    %v997 = vsel %vm698, %v955, 0.0
    %998 = vadd.xlane.f32.xlu0 %v997
    %v999 = vpop.xlane.xlu0 %998
    %v1000 = vsel %vm698, %v957, 0.0
    %1001 = vadd.xlane.f32.xlu0 %v1000
    %v1002 = vpop.xlane.xlu0 %1001
    %v1003 = vsel %vm698, %v959, 0.0
    %1004 = vadd.xlane.f32.xlu0 %v1003
    %v1005 = vpop.xlane.xlu0 %1004
    %v1006 = vsel %vm698, %v961, 0.0
    %1007 = vadd.xlane.f32.xlu0 %v1006
    %v1008 = vpop.xlane.xlu0 %1007
    %v1009 = vsel %vm698, %v963, 0.0
    %1010 = vadd.xlane.f32.xlu0 %v1009
    %v1011 = vpop.xlane.xlu0 %1010
    %v1012 = vrcp.pop %v966
    %v1013 = vmul.f32 %v966, %v1012
    %v1014 = vsub.f32 1.0, %v1013
    %v1015 = vmul.f32 %v1012, %v1014
    %v1016 = vadd.f32 %v1012, %v1015
    %vm1017 = vweird.f32 %v966
    %vm1018 = vweird.f32 %v1012
    %vm1019 = vmor %vm1017, %vm1018
    %v1020 = vsel %vm1019, %v1012, %v1016
    %v1021 = vand.u32 2147483647, %v966
    %vm1022 = vcmp.eq.f32.partialorder %v1021, 8.507059e+37
    %v1023 = vand.u32 %v966, 2147483648
    %v1024 = vor.u32 1.1754944e-38, %v1023
    %v1025 = vsel %vm1022, %v1024, %v1020
    %v1026 = vmul.f32 %v933, %v1025
    %v1027 = vrcp.pop %v969
    %v1028 = vmul.f32 %v969, %v1027
    %v1029 = vsub.f32 1.0, %v1028
    %v1030 = vmul.f32 %v1027, %v1029
    %v1031 = vadd.f32 %v1027, %v1030
    %vm1032 = vweird.f32 %v969
    %vm1033 = vweird.f32 %v1027
    %vm1034 = vmor %vm1032, %vm1033
    %v1035 = vsel %vm1034, %v1027, %v1031
    %v1036 = vand.u32 2147483647, %v969
    %vm1037 = vcmp.eq.f32.partialorder %v1036, 8.507059e+37
    %v1038 = vand.u32 %v969, 2147483648
    %v1039 = vor.u32 1.1754944e-38, %v1038
    %v1040 = vsel %vm1037, %v1039, %v1035
    %v1041 = vmul.f32 %v935, %v1040
    %v1042 = vrcp.pop %v972
    %v1043 = vmul.f32 %v972, %v1042
    %v1044 = vsub.f32 1.0, %v1043
    %v1045 = vmul.f32 %v1042, %v1044
    %v1046 = vadd.f32 %v1042, %v1045
    %vm1047 = vweird.f32 %v972
    %vm1048 = vweird.f32 %v1042
    %vm1049 = vmor %vm1047, %vm1048
    %v1050 = vsel %vm1049, %v1042, %v1046
    %v1051 = vand.u32 2147483647, %v972
    %vm1052 = vcmp.eq.f32.partialorder %v1051, 8.507059e+37
    %v1053 = vand.u32 %v972, 2147483648
    %v1054 = vor.u32 1.1754944e-38, %v1053
    %v1055 = vsel %vm1052, %v1054, %v1050
    %v1056 = vmul.f32 %v937, %v1055
    %v1057 = vrcp.pop %v975
    %v1058 = vmul.f32 %v975, %v1057
    %v1059 = vsub.f32 1.0, %v1058
    %v1060 = vmul.f32 %v1057, %v1059
    %v1061 = vadd.f32 %v1057, %v1060
    %vm1062 = vweird.f32 %v975
    %vm1063 = vweird.f32 %v1057
    %vm1064 = vmor %vm1062, %vm1063
    %v1065 = vsel %vm1064, %v1057, %v1061
    %v1066 = vand.u32 2147483647, %v975
    %vm1067 = vcmp.eq.f32.partialorder %v1066, 8.507059e+37
    %v1068 = vand.u32 %v975, 2147483648
    %v1069 = vor.u32 1.1754944e-38, %v1068
    %v1070 = vsel %vm1067, %v1069, %v1065
    %v1071 = vmul.f32 %v939, %v1070
    %v1072 = vrcp.pop %v978
    %v1073 = vmul.f32 %v978, %v1072
    %v1074 = vsub.f32 1.0, %v1073
    %v1075 = vmul.f32 %v1072, %v1074
    %v1076 = vadd.f32 %v1072, %v1075
    %vm1077 = vweird.f32 %v978
    %vm1078 = vweird.f32 %v1072
    %vm1079 = vmor %vm1077, %vm1078
    %v1080 = vsel %vm1079, %v1072, %v1076
    %v1081 = vand.u32 2147483647, %v978
    %vm1082 = vcmp.eq.f32.partialorder %v1081, 8.507059e+37
    %v1083 = vand.u32 %v978, 2147483648
    %v1084 = vor.u32 1.1754944e-38, %v1083
    %v1085 = vsel %vm1082, %v1084, %v1080
    %v1086 = vmul.f32 %v941, %v1085
    %v1087 = vrcp.pop %v981
    %v1088 = vmul.f32 %v981, %v1087
    %v1089 = vsub.f32 1.0, %v1088
    %v1090 = vmul.f32 %v1087, %v1089
    %v1091 = vadd.f32 %v1087, %v1090
    %vm1092 = vweird.f32 %v981
    %vm1093 = vweird.f32 %v1087
    %vm1094 = vmor %vm1092, %vm1093
    %v1095 = vsel %vm1094, %v1087, %v1091
    %v1096 = vand.u32 2147483647, %v981
    %vm1097 = vcmp.eq.f32.partialorder %v1096, 8.507059e+37
    %v1098 = vand.u32 %v981, 2147483648
    %v1099 = vor.u32 1.1754944e-38, %v1098
    %v1100 = vsel %vm1097, %v1099, %v1095
    %v1101 = vmul.f32 %v943, %v1100
    %v1102 = vrcp.pop %v984
    %v1103 = vmul.f32 %v984, %v1102
    %v1104 = vsub.f32 1.0, %v1103
    %v1105 = vmul.f32 %v1102, %v1104
    %v1106 = vadd.f32 %v1102, %v1105
    %vm1107 = vweird.f32 %v984
    %vm1108 = vweird.f32 %v1102
    %vm1109 = vmor %vm1107, %vm1108
    %v1110 = vsel %vm1109, %v1102, %v1106
    %v1111 = vand.u32 2147483647, %v984
    %vm1112 = vcmp.eq.f32.partialorder %v1111, 8.507059e+37
    %v1113 = vand.u32 %v984, 2147483648
    %v1114 = vor.u32 1.1754944e-38, %v1113
    %v1115 = vsel %vm1112, %v1114, %v1110
    %v1116 = vmul.f32 %v945, %v1115
    %v1117 = vrcp.pop %v987
    %v1118 = vmul.f32 %v987, %v1117
    %v1119 = vsub.f32 1.0, %v1118
    %v1120 = vmul.f32 %v1117, %v1119
    %v1121 = vadd.f32 %v1117, %v1120
    %vm1122 = vweird.f32 %v987
    %vm1123 = vweird.f32 %v1117
    %vm1124 = vmor %vm1122, %vm1123
    %v1125 = vsel %vm1124, %v1117, %v1121
    %v1126 = vand.u32 2147483647, %v987
    %vm1127 = vcmp.eq.f32.partialorder %v1126, 8.507059e+37
    %v1128 = vand.u32 %v987, 2147483648
    %v1129 = vor.u32 1.1754944e-38, %v1128
    %v1130 = vsel %vm1127, %v1129, %v1125
    %v1131 = vmul.f32 %v947, %v1130
    %v1132 = vrcp.pop %v990
    %v1133 = vmul.f32 %v990, %v1132
    %v1134 = vsub.f32 1.0, %v1133
    %v1135 = vmul.f32 %v1132, %v1134
    %v1136 = vadd.f32 %v1132, %v1135
    %vm1137 = vweird.f32 %v990
    %vm1138 = vweird.f32 %v1132
    %vm1139 = vmor %vm1137, %vm1138
    %v1140 = vsel %vm1139, %v1132, %v1136
    %v1141 = vand.u32 2147483647, %v990
    %vm1142 = vcmp.eq.f32.partialorder %v1141, 8.507059e+37
    %v1143 = vand.u32 %v990, 2147483648
    %v1144 = vor.u32 1.1754944e-38, %v1143
    %v1145 = vsel %vm1142, %v1144, %v1140
    %v1146 = vmul.f32 %v949, %v1145
    %v1147 = vrcp.pop %v993
    %v1148 = vmul.f32 %v993, %v1147
    %v1149 = vsub.f32 1.0, %v1148
    %v1150 = vmul.f32 %v1147, %v1149
    %v1151 = vadd.f32 %v1147, %v1150
    %vm1152 = vweird.f32 %v993
    %vm1153 = vweird.f32 %v1147
    %vm1154 = vmor %vm1152, %vm1153
    %v1155 = vsel %vm1154, %v1147, %v1151
    %v1156 = vand.u32 2147483647, %v993
    %vm1157 = vcmp.eq.f32.partialorder %v1156, 8.507059e+37
    %v1158 = vand.u32 %v993, 2147483648
    %v1159 = vor.u32 1.1754944e-38, %v1158
    %v1160 = vsel %vm1157, %v1159, %v1155
    %v1161 = vmul.f32 %v951, %v1160
    %v1162 = vrcp.pop %v996
    %v1163 = vmul.f32 %v996, %v1162
    %v1164 = vsub.f32 1.0, %v1163
    %v1165 = vmul.f32 %v1162, %v1164
    %v1166 = vadd.f32 %v1162, %v1165
    %vm1167 = vweird.f32 %v996
    %vm1168 = vweird.f32 %v1162
    %vm1169 = vmor %vm1167, %vm1168
    %v1170 = vsel %vm1169, %v1162, %v1166
    %v1171 = vand.u32 2147483647, %v996
    %vm1172 = vcmp.eq.f32.partialorder %v1171, 8.507059e+37
    %v1173 = vand.u32 %v996, 2147483648
    %v1174 = vor.u32 1.1754944e-38, %v1173
    %v1175 = vsel %vm1172, %v1174, %v1170
    %v1176 = vmul.f32 %v953, %v1175
    %v1177 = vrcp.pop %v999
    %v1178 = vmul.f32 %v999, %v1177
    %v1179 = vsub.f32 1.0, %v1178
    %v1180 = vmul.f32 %v1177, %v1179
    %v1181 = vadd.f32 %v1177, %v1180
    %vm1182 = vweird.f32 %v999
    %vm1183 = vweird.f32 %v1177
    %vm1184 = vmor %vm1182, %vm1183
    %v1185 = vsel %vm1184, %v1177, %v1181
    %v1186 = vand.u32 2147483647, %v999
    %vm1187 = vcmp.eq.f32.partialorder %v1186, 8.507059e+37
    %v1188 = vand.u32 %v999, 2147483648
    %v1189 = vor.u32 1.1754944e-38, %v1188
    %v1190 = vsel %vm1187, %v1189, %v1185
    %v1191 = vmul.f32 %v955, %v1190
    %v1192 = vrcp.pop %v1002
    %v1193 = vmul.f32 %v1002, %v1192
    %v1194 = vsub.f32 1.0, %v1193
    %v1195 = vmul.f32 %v1192, %v1194
    %v1196 = vadd.f32 %v1192, %v1195
    %vm1197 = vweird.f32 %v1002
    %vm1198 = vweird.f32 %v1192
    %vm1199 = vmor %vm1197, %vm1198
    %v1200 = vsel %vm1199, %v1192, %v1196
    %v1201 = vand.u32 2147483647, %v1002
    %vm1202 = vcmp.eq.f32.partialorder %v1201, 8.507059e+37
    %v1203 = vand.u32 %v1002, 2147483648
    %v1204 = vor.u32 1.1754944e-38, %v1203
    %v1205 = vsel %vm1202, %v1204, %v1200
    %v1206 = vmul.f32 %v957, %v1205
    %v1207 = vrcp.pop %v1005
    %v1208 = vmul.f32 %v1005, %v1207
    %v1209 = vsub.f32 1.0, %v1208
    %v1210 = vmul.f32 %v1207, %v1209
    %v1211 = vadd.f32 %v1207, %v1210
    %vm1212 = vweird.f32 %v1005
    %vm1213 = vweird.f32 %v1207
    %vm1214 = vmor %vm1212, %vm1213
    %v1215 = vsel %vm1214, %v1207, %v1211
    %v1216 = vand.u32 2147483647, %v1005
    %vm1217 = vcmp.eq.f32.partialorder %v1216, 8.507059e+37
    %v1218 = vand.u32 %v1005, 2147483648
    %v1219 = vor.u32 1.1754944e-38, %v1218
    %v1220 = vsel %vm1217, %v1219, %v1215
    %v1221 = vmul.f32 %v959, %v1220
    %v1222 = vrcp.pop %v1008
    %v1223 = vmul.f32 %v1008, %v1222
    %v1224 = vsub.f32 1.0, %v1223
    %v1225 = vmul.f32 %v1222, %v1224
    %v1226 = vadd.f32 %v1222, %v1225
    %vm1227 = vweird.f32 %v1008
    %vm1228 = vweird.f32 %v1222
    %vm1229 = vmor %vm1227, %vm1228
    %v1230 = vsel %vm1229, %v1222, %v1226
    %v1231 = vand.u32 2147483647, %v1008
    %vm1232 = vcmp.eq.f32.partialorder %v1231, 8.507059e+37
    %v1233 = vand.u32 %v1008, 2147483648
    %v1234 = vor.u32 1.1754944e-38, %v1233
    %v1235 = vsel %vm1232, %v1234, %v1230
    %v1236 = vmul.f32 %v961, %v1235
    %v1237 = vrcp.pop %v1011
    %v1238 = vmul.f32 %v1011, %v1237
    %v1239 = vsub.f32 1.0, %v1238
    %v1240 = vmul.f32 %v1237, %v1239
    %v1241 = vadd.f32 %v1237, %v1240
    %vm1242 = vweird.f32 %v1011
    %vm1243 = vweird.f32 %v1237
    %vm1244 = vmor %vm1242, %vm1243
    %v1245 = vsel %vm1244, %v1237, %v1241
    %v1246 = vand.u32 2147483647, %v1011
    %vm1247 = vcmp.eq.f32.partialorder %v1246, 8.507059e+37
    %v1248 = vand.u32 %v1011, 2147483648
    %v1249 = vor.u32 1.1754944e-38, %v1248
    %v1250 = vsel %vm1247, %v1249, %v1245
    %v1251 = vmul.f32 %v963, %v1250
    %v1252 = vpack.c.bf16 %v1026, %v1026
    %v1253 = vpack.c.bf16 %v1041, %v1041
    %v1254 = vpack.c.bf16 %v1056, %v1056
    %v1255 = vpack.c.bf16 %v1071, %v1071
    %v1256 = vpack.c.bf16 %v1086, %v1086
    %v1257 = vpack.c.bf16 %v1101, %v1101
    %v1258 = vpack.c.bf16 %v1116, %v1116
    %v1259 = vpack.c.bf16 %v1131, %v1131
    %v1260 = vpack.c.bf16 %v1146, %v1146
    %v1261 = vpack.c.bf16 %v1161, %v1161
    %v1262 = vpack.c.bf16 %v1176, %v1176
    %v1263 = vpack.c.bf16 %v1191, %v1191
    %v1264 = vpack.c.bf16 %v1206, %v1206
    %v1265 = vpack.c.bf16 %v1221, %v1221
    %v1266 = vpack.c.bf16 %v1236, %v1236
    %v1267 = vpack.c.bf16 %v1251, %v1251
    %v1268 = vpack.c.bf16 %v623, %v623
    %v1269 = vpack.c.bf16 %v625, %v625
    %v1270 = vpack.c.bf16 %v628, %v628
    %v1271 = vpack.c.bf16 %v630, %v630
    %v1272 = vpack.c.bf16 %v633, %v633
    %v1273 = vpack.c.bf16 %v635, %v635
    %v1274 = vpack.c.bf16 %v638, %v638
    %v1275 = vpack.c.bf16 %v640, %v640
    %v1276 = vpack.c.bf16 %v643, %v643
    %v1277 = vpack.c.bf16 %v645, %v645
    %v1278 = vpack.c.bf16 %v648, %v648
    %v1279 = vpack.c.bf16 %v650, %v650
    %v1280 = vpack.c.bf16 %v653, %v653
    %v1281 = vpack.c.bf16 %v655, %v655
    %v1282 = vpack.c.bf16 %v658, %v658
    %v1283 = vpack.c.bf16 %v660, %v660
    %v1292 = vunpack.c.l.b16 %v1252
    %v1293 = vunpack.c.l.b16 %v1253
    %v1294 = vunpack.c.l.b16 %v1254
    %v1295 = vunpack.c.l.b16 %v1255
    %v1296 = vunpack.c.l.b16 %v1256
    %v1297 = vunpack.c.l.b16 %v1257
    %v1298 = vunpack.c.l.b16 %v1258
    %v1299 = vunpack.c.l.b16 %v1259
    %v1300 = vpack.c.b16 %v1293, %v1292
    %v1301 = vpack.c.b16 %v1295, %v1294
    %v1302 = vpack.c.b16 %v1297, %v1296
    %v1303 = vpack.c.b16 %v1299, %v1298
    %v1312 = vunpack.c.l.b16 %v1268
    %v1313 = vunpack.c.l.b16 %v1269
    %v1314 = vunpack.c.l.b16 %v1270
    %v1315 = vunpack.c.l.b16 %v1271
    %v1316 = vunpack.c.l.b16 %v1272
    %v1317 = vunpack.c.l.b16 %v1273
    %v1318 = vunpack.c.l.b16 %v1274
    %v1319 = vunpack.c.l.b16 %v1275
    %v1320 = vpack.c.b16 %v1313, %v1312
    %v1321 = vpack.c.b16 %v1315, %v1314
    %v1322 = vpack.c.b16 %v1317, %v1316
    %v1323 = vpack.c.b16 %v1319, %v1318
    %v1329 = vsel %vm698, %v1300, 0
    %v1332 = vsel %vm698, %v1301, 0
    %v1335 = vsel %vm698, %v1302, 0
    %v1338 = vsel %vm698, %v1303, 0
    %1340 = vmatpush.bf16.msra.mxu0 0
    %1341 = vmatpush.bf16.msra.mxu0 0
    %1342 = vmatpush.bf16.msra.mxu0 0
    %1343 = vmatpush.bf16.msra.mxu0 0
    %1344 = vmatpush.bf16.msra.mxu0 %v1323
    %1345 = vmatpush.bf16.msra.mxu0 %v1322
    %1346 = vmatpush.bf16.msra.mxu0 %v1321
    %1347 = vmatpush.bf16.msra.mxu0 %v1320
    %1348 = vmatmul.bf16.gmra.mxu0 %v1329
    %v1349 = vpop.f32.mrf.mxu0
    %v1350 = vadd.f32 0.0, %v1349
    %v1351 = vpop.f32.mrf.mxu0
    %v1352 = vadd.f32 0.0, %v1351
    %1353 = vmatmul.bf16.gmra.mxu0 %v1332
    %v1354 = vpop.f32.mrf.mxu0
    %v1355 = vadd.f32 0.0, %v1354
    %v1356 = vpop.f32.mrf.mxu0
    %v1357 = vadd.f32 0.0, %v1356
    %1358 = vmatmul.bf16.gmra.mxu0 %v1335
    %v1359 = vpop.f32.mrf.mxu0
    %v1360 = vadd.f32 0.0, %v1359
    %v1361 = vpop.f32.mrf.mxu0
    %v1362 = vadd.f32 0.0, %v1361
    %1363 = vmatmul.bf16.gmra.mxu0 %v1338
    %v1364 = vpop.f32.mrf.mxu0
    %v1365 = vadd.f32 0.0, %v1364
    %v1366 = vpop.f32.mrf.mxu0
    %v1367 = vadd.f32 0.0, %v1366
    %1368 = vdwg.mxu0
    %v1377 = vunpack.c.l.b16 %v1260
    %v1378 = vunpack.c.l.b16 %v1261
    %v1379 = vunpack.c.l.b16 %v1262
    %v1380 = vunpack.c.l.b16 %v1263
    %v1381 = vunpack.c.l.b16 %v1264
    %v1382 = vunpack.c.l.b16 %v1265
    %v1383 = vunpack.c.l.b16 %v1266
    %v1384 = vunpack.c.l.b16 %v1267
    %v1385 = vpack.c.b16 %v1378, %v1377
    %v1386 = vpack.c.b16 %v1380, %v1379
    %v1387 = vpack.c.b16 %v1382, %v1381
    %v1388 = vpack.c.b16 %v1384, %v1383
    %v1397 = vunpack.c.l.b16 %v1276
    %v1398 = vunpack.c.l.b16 %v1277
    %v1399 = vunpack.c.l.b16 %v1278
    %v1400 = vunpack.c.l.b16 %v1279
    %v1401 = vunpack.c.l.b16 %v1280
    %v1402 = vunpack.c.l.b16 %v1281
    %v1403 = vunpack.c.l.b16 %v1282
    %v1404 = vunpack.c.l.b16 %v1283
    %v1405 = vpack.c.b16 %v1398, %v1397
    %v1406 = vpack.c.b16 %v1400, %v1399
    %v1407 = vpack.c.b16 %v1402, %v1401
    %v1408 = vpack.c.b16 %v1404, %v1403
    %v1414 = vsel %vm698, %v1385, 0
    %v1417 = vsel %vm698, %v1386, 0
    %v1420 = vsel %vm698, %v1387, 0
    %v1423 = vsel %vm698, %v1388, 0
    %1425 = vmatpush.bf16.msra.mxu0 0
    %1426 = vmatpush.bf16.msra.mxu0 0
    %1427 = vmatpush.bf16.msra.mxu0 0
    %1428 = vmatpush.bf16.msra.mxu0 0
    %1429 = vmatpush.bf16.msra.mxu0 %v1408
    %1430 = vmatpush.bf16.msra.mxu0 %v1407
    %1431 = vmatpush.bf16.msra.mxu0 %v1406
    %1432 = vmatpush.bf16.msra.mxu0 %v1405
    %1433 = vmatmul.bf16.gmra.mxu0 %v1414
    %v1434 = vpop.f32.mrf.mxu0
    %v1435 = vadd.f32 0.0, %v1434
    %v1436 = vpop.f32.mrf.mxu0
    %v1437 = vadd.f32 0.0, %v1436
    %1438 = vmatmul.bf16.gmra.mxu0 %v1417
    %v1439 = vpop.f32.mrf.mxu0
    %v1440 = vadd.f32 0.0, %v1439
    %v1441 = vpop.f32.mrf.mxu0
    %v1442 = vadd.f32 0.0, %v1441
    %1443 = vmatmul.bf16.gmra.mxu0 %v1420
    %v1444 = vpop.f32.mrf.mxu0
    %v1445 = vadd.f32 0.0, %v1444
    %v1446 = vpop.f32.mrf.mxu0
    %v1447 = vadd.f32 0.0, %v1446
    %1448 = vmatmul.bf16.gmra.mxu0 %v1423
    %v1449 = vpop.f32.mrf.mxu0
    %v1450 = vadd.f32 0.0, %v1449
    %v1451 = vpop.f32.mrf.mxu0
    %v1452 = vadd.f32 0.0, %v1451
    %1453 = vdwg.mxu0
    %1454 = vst.msk [vmem:[#allocation2] sm:$0xff] %vm698, %v1350
    %1455 = vst.msk [vmem:[#allocation2 + $0x8] sm:$0xff] %vm698, %v1352
    %1456 = vst.msk [vmem:[#allocation2 + $0x10] sm:$0xff] %vm698, %v1355
    %1457 = vst.msk [vmem:[#allocation2 + $0x18] sm:$0xff] %vm698, %v1357
    %1458 = vst.msk [vmem:[#allocation2 + $0x20] sm:$0xff] %vm698, %v1360
    %1459 = vst.msk [vmem:[#allocation2 + $0x28] sm:$0xff] %vm698, %v1362
    %1460 = vst.msk [vmem:[#allocation2 + $0x30] sm:$0xff] %vm698, %v1365
    %1461 = vst.msk [vmem:[#allocation2 + $0x38] sm:$0xff] %vm698, %v1367
    %1462 = vst.msk [vmem:[#allocation2 + $0x40] sm:$0xff] %vm698, %v1435
    %1463 = vst.msk [vmem:[#allocation2 + $0x48] sm:$0xff] %vm698, %v1437
    %1464 = vst.msk [vmem:[#allocation2 + $0x50] sm:$0xff] %vm698, %v1440
    %1465 = vst.msk [vmem:[#allocation2 + $0x58] sm:$0xff] %vm698, %v1442
    %1466 = vst.msk [vmem:[#allocation2 + $0x60] sm:$0xff] %vm698, %v1445
    %1467 = vst.msk [vmem:[#allocation2 + $0x68] sm:$0xff] %vm698, %v1447
    %1468 = vst.msk [vmem:[#allocation2 + $0x70] sm:$0xff] %vm698, %v1450
    %1469 = vst.msk [vmem:[#allocation2 + $0x78] sm:$0xff] %vm698, %v1452
    // Predicated region
    $region14: #{head_forward.1} parent=1 // pred_check
      _
    $region15: #{head_forward.1} parent=1 // pred_check_branch
      %1471 = sbr.rel (0) target = $region17
    $region16: #{head_forward.1} parent=1 // pred_region
      %1473 = vsyncadd [#allocation3], 0
      %s1474 = sshll.u32 [#allocation2], 4
      %s1475 = int_to_ptr.vmem [resolvable:$true] %s1474
      %s1476 = sshll.u32 %s3, 4
      %s1477 = int_to_ptr.hbm [resolvable:$true] %s1476
      %1482 = dma.vmem_to_hbm [thread:$0]  %s1475, 2048, %s1477, [#allocation3], 128, 128, 8
    $region17: #{head_forward.1} parent=1 // pred_fallthru
      _
    // Predicated region
    $region18: #{head_forward.1} parent=1 // pred_check
      _
    $region19: #{head_forward.1} parent=1 // pred_check_branch
      %1484 = sbr.rel (0) target = $region21
    $region20: #{head_forward.1} parent=1 // pred_region
      %1486 = dma.done [#allocation3], 2048
    $region21: #{head_forward.1} parent=1 // pred_fallthru
      _
    %1487 = vsyncpa [#allocation3], 1

</llo_original>
